<compile_context>
chip_gen: v5e
topology: v5e:2x2
jax: 0.10.0
libtpu: 0.0.40
codegen_flags: <defaults>
</compile_context>

<pallas_src>
import jax
import jax.numpy as jnp
from jax import lax
from jax.experimental import pallas as pl
from jax.experimental.pallas import tpu as pltpu


def _round_up(x, m):
    return (x + m - 1) // m * m


def _ffn_softmax(emb, w1_ref, b1_ref, w2_ref, b2_ref, out_ref):
    """fc1 -> ReLU -> fc2 -> softmax for one (tb, E_pad) tile of embeddings."""
    # fc1 + ReLU (f32 accumulation, f32 bias).
    h = jnp.dot(emb, w1_ref[...], preferred_element_type=jnp.float32) + b1_ref[...]
    h = jnp.maximum(h, 0.0)                                        # (tb, H_pad)
    # fc2 (padded class columns of w2 are zero; their bias is -1e30).
    logits = jnp.dot(h.astype(w2_ref.dtype), w2_ref[...],
                     preferred_element_type=jnp.float32) + b2_ref[...]
    # Softmax over classes (padded lanes contribute exp(-1e30 - m) == 0).
    m = jnp.max(logits, axis=-1, keepdims=True)
    e = jnp.exp(logits - m)
    denom = jnp.sum(e, axis=-1, keepdims=True)
    out_ref[...] = (e * pl.reciprocal(denom, approx=True)).astype(out_ref.dtype)


# --------------------------- VMEM-resident table path ---------------------------

def mlp_kernel_vmem(idx_ref, emb_ref, w1_ref, b1_ref, w2_ref, b2_ref, out_ref):
    # idx_ref : (tb, 1) int32 VMEM tile of token ids
    # emb_ref : (V_pad, E_pad) compute_dtype, resident across grid steps
    tb = idx_ref.shape[0]
    v_pad = emb_ref.shape[0]
    ids = idx_ref[...]                                             # (tb, 1)
    # One-hot row selection on the MXU: an exact lookup of emb_ref rows.
    iota_v = lax.broadcasted_iota(jnp.int32, (tb, v_pad), 1)
    one_hot = (iota_v == ids).astype(emb_ref.dtype)                # (tb, V_pad)
    emb = jnp.dot(one_hot, emb_ref[...],
                  preferred_element_type=jnp.float32).astype(emb_ref.dtype)
    _ffn_softmax(emb, w1_ref, b1_ref, w2_ref, b2_ref, out_ref)


# ------------------------------ HBM-gather path ---------------------------------

def mlp_kernel_hbm(idx_smem, emb_hbm, w1_ref, b1_ref, w2_ref, b2_ref, out_ref,
                   gbuf, gsem):
    # idx_smem : (B_pad,) int32 in SMEM (scalar prefetch)
    # emb_hbm  : (V_pad, E_pad) compute_dtype ref that stays in HBM
    # gbuf     : (2, tb, E_pad) compute_dtype VMEM scratch (double buffer)
    # gsem     : (2,) DMA semaphores, one per buffer slot
    i = pl.program_id(0)
    n = pl.num_programs(0)
    tb = gbuf.shape[1]

    def start_gather(slot, tile):
        base = tile * tb

        @pl.loop(0, tb)
        def _(j):
            pltpu.make_async_copy(
                emb_hbm.at[idx_smem[base + j]],   # one embedding row in HBM
                gbuf.at[slot, j],                 # -> one row of the slot
                gsem.at[slot],
            ).start()

    @pl.when(i == 0)                 # prime slot 0 with the first tile
    def _():
        start_gather(0, 0)

    @pl.when(i + 1 < n)              # prefetch the NEXT tile into the other slot
    def _():
        start_gather((i + 1) % 2, i + 1)

    slot = i % 2
    # All tb row copies of this slot signalled gsem[slot]; a single whole-slot
    # wait retires them (DMA semaphores are incremented by bytes copied).
    pltpu.make_async_copy(gbuf.at[slot], gbuf.at[slot], gsem.at[slot]).wait()

    _ffn_softmax(gbuf[slot], w1_ref, b1_ref, w2_ref, b2_ref, out_ref)


# --------------------------------- wrappers -------------------------------------

def prepare_params(emb_table, w1, b1, w2, b2, *,
                   compute_dtype=jnp.bfloat16,
                   table_in_vmem=None,
                   vmem_table_budget_bytes=2 * 1024 * 1024):
    """Pad & cast parameters ONCE (hoisted out of the per-call path)."""
    V, E = emb_table.shape
    H = w1.shape[1]
    C = w2.shape[1]
    E_pad = _round_up(E, 128)
    H_pad = _round_up(H, 128)
    C_pad = _round_up(C, 128)

    itemsize = jnp.dtype(compute_dtype).itemsize
    v_pad_vmem = _round_up(V, 128)
    if table_in_vmem is None:
        table_in_vmem = (v_pad_vmem * E_pad * itemsize <= vmem_table_budget_bytes
                         and v_pad_vmem <= 1024)
    # VMEM path uses the table as a matmul operand -> pad V to 128 (lane-dense K);
    # HBM path only DMA-gathers whole rows -> 8-row (sublane) alignment suffices.
    V_pad = v_pad_vmem if table_in_vmem else _round_up(V, 8)

    emb_p = jnp.zeros((V_pad, E_pad), compute_dtype).at[:V, :E].set(
        emb_table.astype(compute_dtype))
    w1_p = jnp.zeros((E_pad, H_pad), compute_dtype).at[:E, :H].set(
        w1.astype(compute_dtype))
    b1_p = jnp.zeros((1, H_pad), jnp.float32).at[:, :H].set(
        b1.reshape(1, H).astype(jnp.float32))
    w2_p = jnp.zeros((H_pad, C_pad), compute_dtype).at[:H, :C].set(
        w2.astype(compute_dtype))
    # Padded class logits get a very negative f32 bias so softmax ignores them.
    b2_p = jnp.full((1, C_pad), -1e30, jnp.float32).at[:, :C].set(
        b2.reshape(1, C).astype(jnp.float32))

    return {
        "emb": emb_p, "w1": w1_p, "b1": b1_p, "w2": w2_p, "b2": b2_p,
        "dims": (V, E, H, C),
        "padded_dims": (V_pad, E_pad, H_pad, C_pad),
        "compute_dtype": compute_dtype,
        "table_in_vmem": bool(table_in_vmem),
    }


def _pick_block_b(B, max_block=256):
    # As large as possible (feeds the MXU M dimension, amortizes per-step
    # overhead), but keep >= 2 grid steps when the batch allows (v7x megacore /
    # pipeline) and stay a multiple of 8 sublanes, capped by a VMEM-friendly max.
    bb = _round_up(max(-(-B // 2), 1), 8)
    return max(8, min(bb, max_block, _round_up(B, 8)))


def mlp_forward(idx, params, *, block_b=None, out_dtype=jnp.float32):
    """Forward pass. idx: (B,) int32 token ids; params from prepare_params()."""
    B = idx.shape[0]
    V, E, H, C = params["dims"]
    V_pad, E_pad, H_pad, C_pad = params["padded_dims"]
    compute_dtype = params["compute_dtype"]

    if block_b is None:
        block_b = _pick_block_b(B)
    assert block_b % 8 == 0, "batch tile must be a multiple of 8 sublanes"
    B_pad = _round_up(B, block_b)
    nb = B_pad // block_b

    # Padded batch rows look up row 0 and are sliced off at the end.
    idx_p = jnp.zeros((B_pad,), jnp.int32).at[:B].set(idx.astype(jnp.int32))

    emb_p, w1_p, b1_p = params["emb"], params["w1"], params["b1"]
    w2_p, b2_p = params["w2"], params["b2"]

    # Weights / biases are full-block resident across all grid steps.
    weight_specs = [
        pl.BlockSpec((E_pad, H_pad), lambda i, *_: (0, 0)),   # w1
        pl.BlockSpec((1, H_pad),     lambda i, *_: (0, 0)),   # b1
        pl.BlockSpec((H_pad, C_pad), lambda i, *_: (0, 0)),   # w2
        pl.BlockSpec((1, C_pad),     lambda i, *_: (0, 0)),   # b2
    ]

    if params["table_in_vmem"]:
        idx2d = idx_p.reshape(B_pad, 1)
        grid_spec = pltpu.PrefetchScalarGridSpec(
            num_scalar_prefetch=0,
            grid=(nb,),
            in_specs=[pl.BlockSpec((block_b, 1), lambda i, *_: (i, 0)),   # ids tile
                      pl.BlockSpec((V_pad, E_pad), lambda i, *_: (0, 0))  # table
                      ] + weight_specs,
            out_specs=pl.BlockSpec((block_b, C_pad), lambda i, *_: (i, 0)),
        )
        out = pl.pallas_call(
            mlp_kernel_vmem,
            out_shape=jax.ShapeDtypeStruct((B_pad, C_pad), out_dtype),
            grid_spec=grid_spec,
            compiler_params=pltpu.CompilerParams(
                dimension_semantics=("parallel",),        # tiles are independent
                vmem_limit_bytes=32 * 1024 * 1024),
        )(idx2d, emb_p, w1_p, b1_p, w2_p, b2_p)
    else:
        grid_spec = pltpu.PrefetchScalarGridSpec(
            num_scalar_prefetch=1,                        # token ids -> SMEM
            grid=(nb,),
            in_specs=[pl.BlockSpec(memory_space=pl.ANY)   # table stays in HBM
                      ] + weight_specs,
            out_specs=pl.BlockSpec((block_b, C_pad), lambda i, *_: (i, 0)),
            scratch_shapes=[
                pltpu.VMEM((2, block_b, E_pad), compute_dtype),  # gather dbl-buffer
                pltpu.SemaphoreType.DMA((2,)),                   # one sem per slot
            ],
        )
        out = pl.pallas_call(
            mlp_kernel_hbm,
            out_shape=jax.ShapeDtypeStruct((B_pad, C_pad), out_dtype),
            grid_spec=grid_spec,
            compiler_params=pltpu.CompilerParams(
                # "arbitrary": the cross-step gather prefetch carries state.
                dimension_semantics=("arbitrary",),
                vmem_limit_bytes=32 * 1024 * 1024),
        )(idx_p, emb_p, w1_p, b1_p, w2_p, b2_p)

    return out[:B, :C]


def mlp_reference(idx, emb_table, w1, b1, w2, b2):
    x = emb_table[idx]                     # (B, E)
    x = x.reshape(x.shape[0], -1)          # flatten (identity for seq_len=1)
    x = jnp.maximum(x @ w1 + b1, 0.0)
    x = x @ w2 + b2
    return jax.nn.softmax(x, axis=-1)      # nn.Softmax() -> dim=1 for 2-D input


if __name__ == "__main__":
    vocab_size, embedding_dim, hidden_dim, num_classes = 32, 16, 32, 8
    batch = 256   # -> block_b = 128, two grid steps

    key = jax.random.PRNGKey(0)
    k_idx, k_emb, k_w1, k_b1, k_w2, k_b2 = jax.random.split(key, 6)

    idx = jax.random.randint(k_idx, (batch,), 0, vocab_size, dtype=jnp.int32)
    emb_table = jax.random.normal(k_emb, (vocab_size, embedding_dim), jnp.float32)
    w1 = jax.random.normal(k_w1, (embedding_dim, hidden_dim), jnp.float32) * 0.1
    b1 = jax.random.normal(k_b1, (hidden_dim,), jnp.float32) * 0.1
    w2 = jax.random.normal(k_w2, (hidden_dim, num_classes), jnp.float32) * 0.1
    b2 = jax.random.normal(k_b2, (num_classes,), jnp.float32) * 0.1

    ref = mlp_reference(idx, emb_table, w1, b1, w2, b2)

    # Path 1: small table resident in VMEM (one-hot MXU gather), bf16 operands.
    params_vmem = prepare_params(emb_table, w1, b1, w2, b2,
                                 compute_dtype=jnp.bfloat16)
    assert params_vmem["table_in_vmem"]
    out_vmem = jax.block_until_ready(mlp_forward(idx, params_vmem))
    assert out_vmem.shape == (batch, num_classes)
    assert jnp.allclose(out_vmem, ref, atol=3e-2, rtol=3e-2)
    assert jnp.allclose(jnp.sum(out_vmem, axis=-1), 1.0, atol=5e-3)

    # Path 2: forced HBM-gather path (large-vocab configuration), bf16 table,
    # double-buffered DMA gather prefetched one tile ahead.
    params_hbm = prepare_params(emb_table, w1, b1, w2, b2,
                                compute_dtype=jnp.bfloat16, table_in_vmem=False)
    out_hbm = jax.block_until_ready(mlp_forward(idx, params_hbm))
    assert out_hbm.shape == (batch, num_classes)
    assert jnp.allclose(out_hbm, ref, atol=3e-2, rtol=3e-2)

    # f32 operand path: tight numerics check of the kernel structure itself.
    params_f32 = prepare_params(emb_table, w1, b1, w2, b2,
                                compute_dtype=jnp.float32)
    out_f32 = jax.block_until_ready(mlp_forward(idx, params_f32))
    assert jnp.allclose(out_f32, ref, atol=2e-3, rtol=2e-3)

    print("KERNEL_OK")
</pallas_src>

<mosaic_0001>
module attributes {stable_mosaic.version = 11 : i64} {
  func.func @mlp_kernel_vmem(%arg0: i32, %arg1: memref<128x1xi32, #tpu.memory_space<vmem>>, %arg2: memref<128x128xbf16, #tpu.memory_space<vmem>>, %arg3: memref<128x128xbf16, #tpu.memory_space<vmem>>, %arg4: memref<1x128xf32, #tpu.memory_space<vmem>>, %arg5: memref<128x128xbf16, #tpu.memory_space<vmem>>, %arg6: memref<1x128xf32, #tpu.memory_space<vmem>>, %arg7: memref<128x128xf32, #tpu.memory_space<vmem>>) attributes {dimension_semantics = [#tpu.dimension_semantics<parallel>], iteration_bounds = array<i64: 2>, scalar_prefetch = 0 : i64, scratch_operands = 0 : i64, tpu.core_type = #tpu.core_type<tc>, window_params = [{transform_indices = @transform_0, window_bounds = array<i64: 128, 1>}, {pipeline_mode = #tpu.pipeline_mode<synchronous>, transform_indices = @transform_1, window_bounds = array<i64: 128, 128>}, {pipeline_mode = #tpu.pipeline_mode<synchronous>, transform_indices = @transform_2, window_bounds = array<i64: 128, 128>}, {pipeline_mode = #tpu.pipeline_mode<synchronous>, transform_indices = @transform_3, window_bounds = array<i64: 1, 128>}, {pipeline_mode = #tpu.pipeline_mode<synchronous>, transform_indices = @transform_4, window_bounds = array<i64: 128, 128>}, {pipeline_mode = #tpu.pipeline_mode<synchronous>, transform_indices = @transform_5, window_bounds = array<i64: 1, 128>}, {transform_indices = @transform_6, window_bounds = array<i64: 128, 128>}]} {
    %c0 = arith.constant 0 : index
    %c0_0 = arith.constant 0 : index
    %0 = vector.load %arg1[%c0, %c0_0] : memref<128x1xi32, #tpu.memory_space<vmem>>, vector<128x1xi32>
    %1 = tpu.iota {dimensions = array<i32: 1>} : vector<128x128xi32>
    %2 = vector.broadcast %0 : vector<128x1xi32> to vector<128x128xi32>
    %3 = arith.cmpi eq, %1, %2 : vector<128x128xi32>
    %4 = arith.extui %3 : vector<128x128xi1> to vector<128x128xi32>
    %5 = arith.sitofp %4 : vector<128x128xi32> to vector<128x128xf32>
    %6 = arith.truncf %5 : vector<128x128xf32> to vector<128x128xbf16>
    %c0_1 = arith.constant 0 : index
    %c0_2 = arith.constant 0 : index
    %7 = vector.load %arg2[%c0_1, %c0_2] : memref<128x128xbf16, #tpu.memory_space<vmem>>, vector<128x128xbf16>
    %cst = arith.constant dense<0.000000e+00> : vector<128x128xf32>
    %8 = tpu.matmul %6, %7, %cst {dimension_numbers = #tpu.dot_dimension_numbers<[1], [0], [0], [1], [0, 0, 1, 1], [], []>} : vector<128x128xbf16>, vector<128x128xbf16>, vector<128x128xf32> -> vector<128x128xf32>
    %9 = arith.truncf %8 : vector<128x128xf32> to vector<128x128xbf16>
    %c0_3 = arith.constant 0 : index
    %c0_4 = arith.constant 0 : index
    %10 = vector.load %arg3[%c0_3, %c0_4] : memref<128x128xbf16, #tpu.memory_space<vmem>>, vector<128x128xbf16>
    %cst_5 = arith.constant dense<0.000000e+00> : vector<128x128xf32>
    %11 = tpu.matmul %9, %10, %cst_5 {dimension_numbers = #tpu.dot_dimension_numbers<[1], [0], [0], [1], [0, 0, 1, 1], [], []>} : vector<128x128xbf16>, vector<128x128xbf16>, vector<128x128xf32> -> vector<128x128xf32>
    %c0_6 = arith.constant 0 : index
    %c0_7 = arith.constant 0 : index
    %12 = vector.load %arg4[%c0_6, %c0_7] : memref<1x128xf32, #tpu.memory_space<vmem>>, vector<1x128xf32>
    %13 = vector.broadcast %12 : vector<1x128xf32> to vector<128x128xf32>
    %14 = arith.addf %11, %13 : vector<128x128xf32>
    %cst_8 = arith.constant 0.000000e+00 : f32
    %15 = vector.broadcast %cst_8 : f32 to vector<128x128xf32>
    %16 = arith.maximumf %14, %15 : vector<128x128xf32>
    %17 = arith.truncf %16 : vector<128x128xf32> to vector<128x128xbf16>
    %c0_9 = arith.constant 0 : index
    %c0_10 = arith.constant 0 : index
    %18 = vector.load %arg5[%c0_9, %c0_10] : memref<128x128xbf16, #tpu.memory_space<vmem>>, vector<128x128xbf16>
    %cst_11 = arith.constant dense<0.000000e+00> : vector<128x128xf32>
    %19 = tpu.matmul %17, %18, %cst_11 {dimension_numbers = #tpu.dot_dimension_numbers<[1], [0], [0], [1], [0, 0, 1, 1], [], []>} : vector<128x128xbf16>, vector<128x128xbf16>, vector<128x128xf32> -> vector<128x128xf32>
    %c0_12 = arith.constant 0 : index
    %c0_13 = arith.constant 0 : index
    %20 = vector.load %arg6[%c0_12, %c0_13] : memref<1x128xf32, #tpu.memory_space<vmem>>, vector<1x128xf32>
    %21 = vector.broadcast %20 : vector<1x128xf32> to vector<128x128xf32>
    %22 = arith.addf %19, %21 : vector<128x128xf32>
    %cst_14 = arith.constant dense<0xFF800000> : vector<128xf32>
    %23 = vector.multi_reduction <maximumf>, %22, %cst_14 [1] : vector<128x128xf32> to vector<128xf32>
    %24 = vector.shape_cast %23 : vector<128xf32> to vector<128x1xf32>
    %25 = vector.broadcast %24 : vector<128x1xf32> to vector<128x128xf32>
    %26 = arith.subf %22, %25 : vector<128x128xf32>
    %27 = math.exp %26 : vector<128x128xf32>
    %cst_15 = arith.constant dense<0.000000e+00> : vector<128xf32>
    %28 = vector.multi_reduction <add>, %27, %cst_15 [1] : vector<128x128xf32> to vector<128xf32>
    %29 = vector.shape_cast %28 : vector<128xf32> to vector<128x1xf32>
    %30 = tpu.reciprocal %29 {approx = true} : vector<128x1xf32> -> vector<128x1xf32>
    %31 = vector.broadcast %30 : vector<128x1xf32> to vector<128x128xf32>
    %32 = arith.mulf %27, %31 : vector<128x128xf32>
    %c0_16 = arith.constant 0 : index
    %c0_17 = arith.constant 0 : index
    %33 = vector.load %arg7[%c0_16, %c0_17] : memref<128x128xf32, #tpu.memory_space<vmem>>, vector<128x128xf32>
    tpu.vector_store %arg7[%c0_16, %c0_17], %32 {strides = array<i32>} : memref<128x128xf32, #tpu.memory_space<vmem>>, vector<128x128xf32>,
    return
  }
  func.func @transform_0(%arg0: i32) -> (i32, i32) {
    %c0_i32 = arith.constant 0 : i32
    %c0_i32_0 = arith.constant 0 : i32
    return %arg0, %c0_i32 : i32, i32
  }
  func.func @transform_1(%arg0: i32) -> (i32, i32) {
    %c0_i32 = arith.constant 0 : i32
    %c0_i32_0 = arith.constant 0 : i32
    %c0_i32_1 = arith.constant 0 : i32
    return %c0_i32, %c0_i32_0 : i32, i32
  }
  func.func @transform_2(%arg0: i32) -> (i32, i32) {
    %c0_i32 = arith.constant 0 : i32
    %c0_i32_0 = arith.constant 0 : i32
    %c0_i32_1 = arith.constant 0 : i32
    return %c0_i32, %c0_i32_0 : i32, i32
  }
  func.func @transform_3(%arg0: i32) -> (i32, i32) {
    %c0_i32 = arith.constant 0 : i32
    %c0_i32_0 = arith.constant 0 : i32
    %c0_i32_1 = arith.constant 0 : i32
    return %c0_i32, %c0_i32_0 : i32, i32
  }
  func.func @transform_4(%arg0: i32) -> (i32, i32) {
    %c0_i32 = arith.constant 0 : i32
    %c0_i32_0 = arith.constant 0 : i32
    %c0_i32_1 = arith.constant 0 : i32
    return %c0_i32, %c0_i32_0 : i32, i32
  }
  func.func @transform_5(%arg0: i32) -> (i32, i32) {
    %c0_i32 = arith.constant 0 : i32
    %c0_i32_0 = arith.constant 0 : i32
    %c0_i32_1 = arith.constant 0 : i32
    return %c0_i32, %c0_i32_0 : i32, i32
  }
  func.func @transform_6(%arg0: i32) -> (i32, i32) {
    %c0_i32 = arith.constant 0 : i32
    %c0_i32_0 = arith.constant 0 : i32
    return %arg0, %c0_i32 : i32, i32
  }
}

</mosaic_0001>

<llo_original>
// kernel: tpu_custom_call.1
$region0: #{tpu_custom_call.1}
  #allocation0 [shape = 'u32[]', space=smem, size = 0x4, offset = 0x4, fixed_abs, tag = 'smem constant byte address 0x4 - core index']
  #allocation1 [shape = 'u32[72,128]{1,0:T(1,128)}', space=vmem, size = 0x9000, scoped, tag = 'internal scratch']
  %s0 = inlined_call_operand.vmem [shape: s32[256,1], index: 0, kind: input, shape index: {}]
  %s1 = inlined_call_operand.vmem [shape: bf16[128,128], index: 1, kind: input, shape index: {}]
  %s2 = inlined_call_operand.vmem [shape: bf16[128,128], index: 2, kind: input, shape index: {}]
  %s3 = inlined_call_operand.vmem [shape: f32[1,128], index: 3, kind: input, shape index: {}]
  %s4 = inlined_call_operand.vmem [shape: bf16[128,128], index: 4, kind: input, shape index: {}]
  %s5 = inlined_call_operand.vmem [shape: f32[1,128], index: 5, kind: input, shape index: {}]
  %s6 = inlined_call_operand.hbm [shape: f32[256,128], index: 6, kind: output, shape index: {}]
  %s7 = sld [smem:[#allocation0]]
  $region57: #{tpu_custom_call.1} parent=0
    _
  %s9 = ssub.s32 1, %s7
  %s10 = scalar_select 0, %s9, %s7
  $region1: #{tpu_custom_call.1} parent=0
    #allocation2 [shape = 'u8[131072]{0}', space=vmem, size = 0x20000, scoped, tag = 'output window, operand 0']
    #allocation3 [shape = 's32[2]{0}', space=sflag, size = 0x8, scoped, tag = 'scoped memory for tpu_custom_call.1']
    %11 = vsyncpa [#allocation3], 0
    %s12 = scalar_lea.sflag [#allocation3], 1
    %13 = vsyncpa %s12, 0
    loop: start=0, step=1, limit=4
    $region2: #{tpu_custom_call.1} parent=1 // loop_pre_header
      _
    $region3: #{tpu_custom_call.1} parent=1 // loop_header
      %s15 = sphi 0, %s19
      %p16 = scmp.ge.s32.totalorder %s15, 4
      %s25 = sphi 0, %s27
      %s28 = sphi 0, %s25
      %s29 = sphi 0, %s28
      %s45 = sphi 0, %s29
      %s49 = sphi 0, %s49
      %s51 = sphi 0, %s49
      %s52 = sphi 0, %s51
      %s66 = sphi 0, %s52
      %s70 = sphi 0, %s70
      %s72 = sphi 0, %s70
      %s73 = sphi 0, %s72
      %s87 = sphi 0, %s73
      %s91 = sphi 0, %s91
      %s93 = sphi 0, %s91
      %s94 = sphi 0, %s93
      %s108 = sphi 0, %s94
      %s112 = sphi 0, %s112
      %s114 = sphi 0, %s112
      %s115 = sphi 0, %s114
      %s129 = sphi 0, %s115
      %s133 = sphi 0, %s133
      %s135 = sphi 0, %s133
      %s136 = sphi 0, %s135
      %s150 = sphi 0, %s136
      %s156 = sphi 0, %s158
      %s159 = sphi 0, %s156
      %s160 = sphi 0, %s159
      %s176 = sphi 0, %s160
    $region4: #{tpu_custom_call.1} parent=1 // loop_header_branch
      %18 = sbr.rel (%p16) target = $region8
    $region5: #{tpu_custom_call.1} parent=1 // loop_body
      %s20 = ssub.s32 %s15, 1
      %s21 = ssub.s32 %s15, 2
      %s22 = sadd.s32 %s15, 1
      %s23 = ssub.s32 %s15, %s22
      %p24 = scmp.eq.s32.totalorder %s23, 0
      %s26 = sadd.s32 %s25, 1
      %s27 = scalar_select %p24, %s25, %s26
      %p30 = pneg %p24
      %p31 = scmp.eq.s32.totalorder %s15, 1
      %p32 = por %p30, %p31
      %p33 = scmp.ne.s32.totalorder %s25, %s28
      %p34 = scmp.eq.s32.totalorder %s15, 0
      %p35 = por %p33, %p34
      %p36 = scmp.ne.s32.totalorder %s25, %s28
      %p37 = scmp.eq.s32.totalorder %s20, 1
      %p38 = por %p36, %p37
      %p39 = scmp.ne.s32.totalorder %s28, %s29
      %p40 = scmp.eq.s32.totalorder %s20, 0
      %p41 = por %p39, %p40
      %p42 = scmp.ne.s32.totalorder %s28, %s29
      %p43 = scmp.eq.s32.totalorder %s21, 1
      %p44 = por %p42, %p43
      %p46 = scmp.ne.s32.totalorder %s29, %s45
      %p47 = scmp.eq.s32.totalorder %s21, 0
      %p48 = por %p46, %p47
      %s50 = sadd.s32 %s49, 1
      %p53 = scmp.eq.s32.totalorder %s15, 1
      %p54 = scmp.ne.s32.totalorder %s49, %s51
      %p55 = scmp.eq.s32.totalorder %s15, 0
      %p56 = por %p54, %p55
      %p57 = scmp.ne.s32.totalorder %s49, %s51
      %p58 = scmp.eq.s32.totalorder %s20, 1
      %p59 = por %p57, %p58
      %p60 = scmp.ne.s32.totalorder %s51, %s52
      %p61 = scmp.eq.s32.totalorder %s20, 0
      %p62 = por %p60, %p61
      %p63 = scmp.ne.s32.totalorder %s51, %s52
      %p64 = scmp.eq.s32.totalorder %s21, 1
      %p65 = por %p63, %p64
      %p67 = scmp.ne.s32.totalorder %s52, %s66
      %p68 = scmp.eq.s32.totalorder %s21, 0
      %p69 = por %p67, %p68
      %s71 = sadd.s32 %s70, 1
      %p74 = scmp.eq.s32.totalorder %s15, 1
      %p75 = scmp.ne.s32.totalorder %s70, %s72
      %p76 = scmp.eq.s32.totalorder %s15, 0
      %p77 = por %p75, %p76
      %p78 = scmp.ne.s32.totalorder %s70, %s72
      %p79 = scmp.eq.s32.totalorder %s20, 1
      %p80 = por %p78, %p79
      %p81 = scmp.ne.s32.totalorder %s72, %s73
      %p82 = scmp.eq.s32.totalorder %s20, 0
      %p83 = por %p81, %p82
      %p84 = scmp.ne.s32.totalorder %s72, %s73
      %p85 = scmp.eq.s32.totalorder %s21, 1
      %p86 = por %p84, %p85
      %p88 = scmp.ne.s32.totalorder %s73, %s87
      %p89 = scmp.eq.s32.totalorder %s21, 0
      %p90 = por %p88, %p89
      %s92 = sadd.s32 %s91, 1
      %p95 = scmp.eq.s32.totalorder %s15, 1
      %p96 = scmp.ne.s32.totalorder %s91, %s93
      %p97 = scmp.eq.s32.totalorder %s15, 0
      %p98 = por %p96, %p97
      %p99 = scmp.ne.s32.totalorder %s91, %s93
      %p100 = scmp.eq.s32.totalorder %s20, 1
      %p101 = por %p99, %p100
      %p102 = scmp.ne.s32.totalorder %s93, %s94
      %p103 = scmp.eq.s32.totalorder %s20, 0
      %p104 = por %p102, %p103
      %p105 = scmp.ne.s32.totalorder %s93, %s94
      %p106 = scmp.eq.s32.totalorder %s21, 1
      %p107 = por %p105, %p106
      %p109 = scmp.ne.s32.totalorder %s94, %s108
      %p110 = scmp.eq.s32.totalorder %s21, 0
      %p111 = por %p109, %p110
      %s113 = sadd.s32 %s112, 1
      %p116 = scmp.eq.s32.totalorder %s15, 1
      %p117 = scmp.ne.s32.totalorder %s112, %s114
      %p118 = scmp.eq.s32.totalorder %s15, 0
      %p119 = por %p117, %p118
      %p120 = scmp.ne.s32.totalorder %s112, %s114
      %p121 = scmp.eq.s32.totalorder %s20, 1
      %p122 = por %p120, %p121
      %p123 = scmp.ne.s32.totalorder %s114, %s115
      %p124 = scmp.eq.s32.totalorder %s20, 0
      %p125 = por %p123, %p124
      %p126 = scmp.ne.s32.totalorder %s114, %s115
      %p127 = scmp.eq.s32.totalorder %s21, 1
      %p128 = por %p126, %p127
      %p130 = scmp.ne.s32.totalorder %s115, %s129
      %p131 = scmp.eq.s32.totalorder %s21, 0
      %p132 = por %p130, %p131
      %s134 = sadd.s32 %s133, 1
      %p137 = scmp.eq.s32.totalorder %s15, 1
      %p138 = scmp.ne.s32.totalorder %s133, %s135
      %p139 = scmp.eq.s32.totalorder %s15, 0
      %p140 = por %p138, %p139
      %p141 = scmp.ne.s32.totalorder %s133, %s135
      %p142 = scmp.eq.s32.totalorder %s20, 1
      %p143 = por %p141, %p142
      %p144 = scmp.ne.s32.totalorder %s135, %s136
      %p145 = scmp.eq.s32.totalorder %s20, 0
      %p146 = por %p144, %p145
      %p147 = scmp.ne.s32.totalorder %s135, %s136
      %p148 = scmp.eq.s32.totalorder %s21, 1
      %p149 = por %p147, %p148
      %p151 = scmp.ne.s32.totalorder %s136, %s150
      %p152 = scmp.eq.s32.totalorder %s21, 0
      %p153 = por %p151, %p152
      %s154 = ssub.s32 %s15, %s22
      %p155 = scmp.eq.s32.totalorder %s154, 0
      %s157 = sadd.s32 %s156, 1
      %s158 = scalar_select %p155, %s156, %s157
      %p161 = pneg %p155
      %p162 = scmp.eq.s32.totalorder %s15, 1
      %p163 = por %p161, %p162
      %p164 = scmp.ne.s32.totalorder %s156, %s159
      %p165 = scmp.eq.s32.totalorder %s15, 0
      %p166 = por %p164, %p165
      %p167 = scmp.ne.s32.totalorder %s156, %s159
      %p168 = scmp.eq.s32.totalorder %s20, 1
      %p169 = por %p167, %p168
      %p170 = scmp.ne.s32.totalorder %s159, %s160
      %p171 = scmp.eq.s32.totalorder %s20, 0
      %p172 = por %p170, %p171
      %p173 = scmp.ne.s32.totalorder %s159, %s160
      %p174 = scmp.eq.s32.totalorder %s21, 1
      %p175 = por %p173, %p174
      %p177 = scmp.ne.s32.totalorder %s160, %s176
      %p178 = scmp.eq.s32.totalorder %s21, 0
      %p179 = por %p177, %p178
      %p180 = scmp.le.s32.totalorder 1, %s15
      %p181 = scmp.lt.s32.totalorder %s15, 3
      %p182 = pnand %p180, %p181
      %p183 = pneg %p182
      // Predicated region
      $region9: #{tpu_custom_call.1} parent=5 // pred_check
        _
      $region10: #{tpu_custom_call.1} parent=5 // pred_check_branch
        %185 = sbr.rel (%p182) target = $region12
      $region11: #{tpu_custom_call.1} parent=5 // pred_region
        %s186 = ssub.s32 %s15, 1
        // Predicated region
        $region13: #{tpu_custom_call.1} parent=11 // pred_check
          %p187 = pneg %p62
        $region14: #{tpu_custom_call.1} parent=11 // pred_check_branch
          %189 = sbr.rel (%p187) target = $region16
        $region15: #{tpu_custom_call.1} parent=11 // pred_region
          _
        $region16: #{tpu_custom_call.1} parent=11 // pred_fallthru
          _
        // Predicated region
        $region17: #{tpu_custom_call.1} parent=11 // pred_check
          %p190 = pneg %p83
        $region18: #{tpu_custom_call.1} parent=11 // pred_check_branch
          %192 = sbr.rel (%p190) target = $region20
        $region19: #{tpu_custom_call.1} parent=11 // pred_region
          _
        $region20: #{tpu_custom_call.1} parent=11 // pred_fallthru
          _
        // Predicated region
        $region21: #{tpu_custom_call.1} parent=11 // pred_check
          %p193 = pneg %p104
        $region22: #{tpu_custom_call.1} parent=11 // pred_check_branch
          %195 = sbr.rel (%p193) target = $region24
        $region23: #{tpu_custom_call.1} parent=11 // pred_region
          _
        $region24: #{tpu_custom_call.1} parent=11 // pred_fallthru
          _
        // Predicated region
        $region25: #{tpu_custom_call.1} parent=11 // pred_check
          %p196 = pneg %p125
        $region26: #{tpu_custom_call.1} parent=11 // pred_check_branch
          %198 = sbr.rel (%p196) target = $region28
        $region27: #{tpu_custom_call.1} parent=11 // pred_region
          _
        $region28: #{tpu_custom_call.1} parent=11 // pred_fallthru
          _
        // Predicated region
        $region29: #{tpu_custom_call.1} parent=11 // pred_check
          %p199 = pneg %p146
        $region30: #{tpu_custom_call.1} parent=11 // pred_check_branch
          %201 = sbr.rel (%p199) target = $region32
        $region31: #{tpu_custom_call.1} parent=11 // pred_region
          _
        $region32: #{tpu_custom_call.1} parent=11 // pred_fallthru
          _
      $region12: #{tpu_custom_call.1} parent=5 // pred_fallthru
        _
      %p202 = scmp.lt.s32.totalorder %s15, 2
      // Predicated region
      $region33: #{tpu_custom_call.1} parent=5 // pred_check
        %p203 = pneg %p202
      $region34: #{tpu_custom_call.1} parent=5 // pred_check_branch
        %205 = sbr.rel (%p203) target = $region36
      $region35: #{tpu_custom_call.1} parent=5 // pred_region
        // Predicated region
        $region37: #{tpu_custom_call.1} parent=35 // pred_check
          %p206 = pneg %p35
        $region38: #{tpu_custom_call.1} parent=35 // pred_check_branch
          %208 = sbr.rel (%p206) target = $region40
        $region39: #{tpu_custom_call.1} parent=35 // pred_region
          %s209 = smul.u32 16, %s15
          %p210 = scmp.lt.s32.totalorder %s209, 31
          %s211 = scalar_select %p210, %s209, 31
          %s212 = smul.addr %s211, 8
          %s213 = scalar_lea.vmem %s0, %s212
          %s214 = smul.u32 16, %s15
        $region40: #{tpu_custom_call.1} parent=35 // pred_fallthru
          _
      $region36: #{tpu_custom_call.1} parent=5 // pred_fallthru
        _
      %p215 = scmp.le.s32.totalorder 1, %s15
      %p216 = scmp.lt.s32.totalorder %s15, 3
      %p217 = pnand %p215, %p216
      %p218 = pneg %p217
      // Predicated region
      $region41: #{tpu_custom_call.1} parent=5 // pred_check
        _
      $region42: #{tpu_custom_call.1} parent=5 // pred_check_branch
        %220 = sbr.rel (%p217) target = $region44
      $region43: #{tpu_custom_call.1} parent=5 // pred_region
        %s221 = ssub.s32 %s15, 1
        %s222 = smul.u32 16, %s20
        %p223 = scmp.lt.s32.totalorder %s222, 31
        %s224 = scalar_select %p223, %s222, 31
        %s225 = smul.addr %s224, 8
        %s226 = scalar_lea.vmem %s0, %s225
        %p227 = pneg %p41
        %p228 = pneg %p38
        %p229 = pneg %p62
        %p230 = pneg %p59
        %p231 = pneg %p83
        %p232 = pneg %p80
        %p233 = pneg %p104
        %p234 = pneg %p101
        %p235 = pneg %p125
        %p236 = pneg %p122
        %p237 = pneg %p146
        %p238 = pneg %p143
        %p239 = pneg %p172
        %p240 = pneg %p169
        %s241 = sand.u32 %s159, 1
        %s242 = scalar_lea.sflag [#allocation3], %s241
        %s243 = sand.u32 %s159, 1
        %s244 = smul.addr %s243, 128
        %s245 = scalar_lea.vmem [#allocation2], %s244
        %s246 = smul.u32 16, %s20
        %p247 = scmp.lt.s32.totalorder %s246, 31
        %s248 = scalar_select %p247, %s246, 31
        %s249 = smul.addr %s248, 8
        %s250 = scalar_lea.vmem %s0, %s249
        %s251 = smul.u32 16, %s20
        %s252 = smul.u32 16, %s20
        %v253 = vld [vmem:[%s250] sm:$0xff]
        %v254 = vld [vmem:[%s250 + $0x8] sm:$0xff]
        %v255 = vld [vmem:[%s250 + $0x10] sm:$0xff]
        %v256 = vld [vmem:[%s250 + $0x18] sm:$0xff]
        %v257 = vld [vmem:[%s250 + $0x20] sm:$0xff]
        %v258 = vld [vmem:[%s250 + $0x28] sm:$0xff]
        %v259 = vld [vmem:[%s250 + $0x30] sm:$0xff]
        %v260 = vld [vmem:[%s250 + $0x38] sm:$0xff]
        %v261 = vld [vmem:[%s250 + $0x40] sm:$0xff]
        %v262 = vld [vmem:[%s250 + $0x48] sm:$0xff]
        %v263 = vld [vmem:[%s250 + $0x50] sm:$0xff]
        %v264 = vld [vmem:[%s250 + $0x58] sm:$0xff]
        %v265 = vld [vmem:[%s250 + $0x60] sm:$0xff]
        %v266 = vld [vmem:[%s250 + $0x68] sm:$0xff]
        %v267 = vld [vmem:[%s250 + $0x70] sm:$0xff]
        %v268 = vld [vmem:[%s250 + $0x78] sm:$0xff]
        %v269 = vlaneseq
        %v270 = vand.u32 %v269, 127
        %271 = vset.pattern.permute.xlu0 0
        %272 = vperm.xlu0 %271, %v253
        %v273 = vpop.permute.xlu0 %272
        %274 = vset.pattern.permute.xlu0 0
        %275 = vperm.xlu0 %274, %v254
        %v276 = vpop.permute.xlu0 %275
        %277 = vset.pattern.permute.xlu0 0
        %278 = vperm.xlu0 %277, %v255
        %v279 = vpop.permute.xlu0 %278
        %280 = vset.pattern.permute.xlu0 0
        %281 = vperm.xlu0 %280, %v256
        %v282 = vpop.permute.xlu0 %281
        %283 = vset.pattern.permute.xlu0 0
        %284 = vperm.xlu0 %283, %v257
        %v285 = vpop.permute.xlu0 %284
        %286 = vset.pattern.permute.xlu0 0
        %287 = vperm.xlu0 %286, %v258
        %v288 = vpop.permute.xlu0 %287
        %289 = vset.pattern.permute.xlu0 0
        %290 = vperm.xlu0 %289, %v259
        %v291 = vpop.permute.xlu0 %290
        %292 = vset.pattern.permute.xlu0 0
        %293 = vperm.xlu0 %292, %v260
        %v294 = vpop.permute.xlu0 %293
        %295 = vset.pattern.permute.xlu0 0
        %296 = vperm.xlu0 %295, %v261
        %v297 = vpop.permute.xlu0 %296
        %298 = vset.pattern.permute.xlu0 0
        %299 = vperm.xlu0 %298, %v262
        %v300 = vpop.permute.xlu0 %299
        %301 = vset.pattern.permute.xlu0 0
        %302 = vperm.xlu0 %301, %v263
        %v303 = vpop.permute.xlu0 %302
        %304 = vset.pattern.permute.xlu0 0
        %305 = vperm.xlu0 %304, %v264
        %v306 = vpop.permute.xlu0 %305
        %307 = vset.pattern.permute.xlu0 0
        %308 = vperm.xlu0 %307, %v265
        %v309 = vpop.permute.xlu0 %308
        %310 = vset.pattern.permute.xlu0 0
        %311 = vperm.xlu0 %310, %v266
        %v312 = vpop.permute.xlu0 %311
        %313 = vset.pattern.permute.xlu0 0
        %314 = vperm.xlu0 %313, %v267
        %v315 = vpop.permute.xlu0 %314
        %316 = vset.pattern.permute.xlu0 0
        %317 = vperm.xlu0 %316, %v268
        %v318 = vpop.permute.xlu0 %317
        %vm319 = vcmp.eq.s32.totalorder %v270, %v273
        %vm320 = vcmp.eq.s32.totalorder %v270, %v276
        %vm321 = vcmp.eq.s32.totalorder %v270, %v279
        %vm322 = vcmp.eq.s32.totalorder %v270, %v282
        %vm323 = vcmp.eq.s32.totalorder %v270, %v285
        %vm324 = vcmp.eq.s32.totalorder %v270, %v288
        %vm325 = vcmp.eq.s32.totalorder %v270, %v291
        %vm326 = vcmp.eq.s32.totalorder %v270, %v294
        %vm327 = vcmp.eq.s32.totalorder %v270, %v297
        %vm328 = vcmp.eq.s32.totalorder %v270, %v300
        %vm329 = vcmp.eq.s32.totalorder %v270, %v303
        %vm330 = vcmp.eq.s32.totalorder %v270, %v306
        %vm331 = vcmp.eq.s32.totalorder %v270, %v309
        %vm332 = vcmp.eq.s32.totalorder %v270, %v312
        %vm333 = vcmp.eq.s32.totalorder %v270, %v315
        %vm334 = vcmp.eq.s32.totalorder %v270, %v318
        %v335 = vsel %vm319, 1, 0
        %v336 = vsel %vm320, 1, 0
        %v337 = vsel %vm321, 1, 0
        %v338 = vsel %vm322, 1, 0
        %v339 = vsel %vm323, 1, 0
        %v340 = vsel %vm324, 1, 0
        %v341 = vsel %vm325, 1, 0
        %v342 = vsel %vm326, 1, 0
        %v343 = vsel %vm327, 1, 0
        %v344 = vsel %vm328, 1, 0
        %v345 = vsel %vm329, 1, 0
        %v346 = vsel %vm330, 1, 0
        %v347 = vsel %vm331, 1, 0
        %v348 = vsel %vm332, 1, 0
        %v349 = vsel %vm333, 1, 0
        %v350 = vsel %vm334, 1, 0
        %v351 = vcvt.s32.f32 %v335
        %v352 = vcvt.s32.f32 %v336
        %v353 = vcvt.s32.f32 %v337
        %v354 = vcvt.s32.f32 %v338
        %v355 = vcvt.s32.f32 %v339
        %v356 = vcvt.s32.f32 %v340
        %v357 = vcvt.s32.f32 %v341
        %v358 = vcvt.s32.f32 %v342
        %v359 = vcvt.s32.f32 %v343
        %v360 = vcvt.s32.f32 %v344
        %v361 = vcvt.s32.f32 %v345
        %v362 = vcvt.s32.f32 %v346
        %v363 = vcvt.s32.f32 %v347
        %v364 = vcvt.s32.f32 %v348
        %v365 = vcvt.s32.f32 %v349
        %v366 = vcvt.s32.f32 %v350
        %v367 = vpack.c.bf16 %v352, %v351
        %v368 = vpack.c.bf16 %v354, %v353
        %v369 = vpack.c.bf16 %v356, %v355
        %v370 = vpack.c.bf16 %v358, %v357
        %v371 = vpack.c.bf16 %v360, %v359
        %v372 = vpack.c.bf16 %v362, %v361
        %v373 = vpack.c.bf16 %v364, %v363
        %v374 = vpack.c.bf16 %v366, %v365
        %v375 = vld [vmem:[%s1] sm:$0xf]
        %v376 = vld [vmem:[%s1 + $0x4] sm:$0xf]
        %v377 = vld [vmem:[%s1 + $0x8] sm:$0xf]
        %v378 = vld [vmem:[%s1 + $0xc] sm:$0xf]
        %v379 = vld [vmem:[%s1 + $0x10] sm:$0xf]
        %v380 = vld [vmem:[%s1 + $0x14] sm:$0xf]
        %v381 = vld [vmem:[%s1 + $0x18] sm:$0xf]
        %v382 = vld [vmem:[%s1 + $0x1c] sm:$0xf]
        %v383 = vld [vmem:[%s1 + $0x20] sm:$0xf]
        %v384 = vld [vmem:[%s1 + $0x24] sm:$0xf]
        %v385 = vld [vmem:[%s1 + $0x28] sm:$0xf]
        %v386 = vld [vmem:[%s1 + $0x2c] sm:$0xf]
        %v387 = vld [vmem:[%s1 + $0x30] sm:$0xf]
        %v388 = vld [vmem:[%s1 + $0x34] sm:$0xf]
        %v389 = vld [vmem:[%s1 + $0x38] sm:$0xf]
        %v390 = vld [vmem:[%s1 + $0x3c] sm:$0xf]
        %v407 = vunpack.c.l.b16 %v375
        %v408 = vunpack.c.l.b16 %v376
        %v409 = vunpack.c.l.b16 %v377
        %v410 = vunpack.c.l.b16 %v378
        %v411 = vunpack.c.l.b16 %v379
        %v412 = vunpack.c.l.b16 %v380
        %v413 = vunpack.c.l.b16 %v381
        %v414 = vunpack.c.l.b16 %v382
        %v415 = vunpack.c.l.b16 %v383
        %v416 = vunpack.c.l.b16 %v384
        %v417 = vunpack.c.l.b16 %v385
        %v418 = vunpack.c.l.b16 %v386
        %v419 = vunpack.c.l.b16 %v387
        %v420 = vunpack.c.l.b16 %v388
        %v421 = vunpack.c.l.b16 %v389
        %v422 = vunpack.c.l.b16 %v390
        %v423 = vpack.c.b16 %v408, %v407
        %v424 = vpack.c.b16 %v410, %v409
        %v425 = vpack.c.b16 %v412, %v411
        %v426 = vpack.c.b16 %v414, %v413
        %v427 = vpack.c.b16 %v416, %v415
        %v428 = vpack.c.b16 %v418, %v417
        %v429 = vpack.c.b16 %v420, %v419
        %v430 = vpack.c.b16 %v422, %v421
        %439 = vmatpush.bf16.msra.mxu0 %v430
        %440 = vmatpush.bf16.msra.mxu0 %v429
        %441 = vmatpush.bf16.msra.mxu0 %v428
        %442 = vmatpush.bf16.msra.mxu0 %v427
        %443 = vmatpush.bf16.msra.mxu0 %v426
        %444 = vmatpush.bf16.msra.mxu0 %v425
        %445 = vmatpush.bf16.msra.mxu0 %v424
        %446 = vmatpush.bf16.msra.mxu0 %v423
        %447 = vmatmul.bf16.gmra.mxu0 %v367
        %v448 = vpop.f32.mrf.mxu0
        %v449 = vadd.f32 0.0, %v448
        %v450 = vpop.f32.mrf.mxu0
        %v451 = vadd.f32 0.0, %v450
        %452 = vmatmul.bf16.gmra.mxu0 %v368
        %v453 = vpop.f32.mrf.mxu0
        %v454 = vadd.f32 0.0, %v453
        %v455 = vpop.f32.mrf.mxu0
        %v456 = vadd.f32 0.0, %v455
        %457 = vmatmul.bf16.gmra.mxu0 %v369
        %v458 = vpop.f32.mrf.mxu0
        %v459 = vadd.f32 0.0, %v458
        %v460 = vpop.f32.mrf.mxu0
        %v461 = vadd.f32 0.0, %v460
        %462 = vmatmul.bf16.gmra.mxu0 %v370
        %v463 = vpop.f32.mrf.mxu0
        %v464 = vadd.f32 0.0, %v463
        %v465 = vpop.f32.mrf.mxu0
        %v466 = vadd.f32 0.0, %v465
        %467 = vmatmul.bf16.gmra.mxu0 %v371
        %v468 = vpop.f32.mrf.mxu0
        %v469 = vadd.f32 0.0, %v468
        %v470 = vpop.f32.mrf.mxu0
        %v471 = vadd.f32 0.0, %v470
        %472 = vmatmul.bf16.gmra.mxu0 %v372
        %v473 = vpop.f32.mrf.mxu0
        %v474 = vadd.f32 0.0, %v473
        %v475 = vpop.f32.mrf.mxu0
        %v476 = vadd.f32 0.0, %v475
        %477 = vmatmul.bf16.gmra.mxu0 %v373
        %v478 = vpop.f32.mrf.mxu0
        %v479 = vadd.f32 0.0, %v478
        %v480 = vpop.f32.mrf.mxu0
        %v481 = vadd.f32 0.0, %v480
        %482 = vmatmul.bf16.gmra.mxu0 %v374
        %v483 = vpop.f32.mrf.mxu0
        %v484 = vadd.f32 0.0, %v483
        %v485 = vpop.f32.mrf.mxu0
        %v486 = vadd.f32 0.0, %v485
        %487 = vdwg.mxu0
        %v488 = vpack.c.bf16 %v451, %v449
        %v489 = vpack.c.bf16 %v456, %v454
        %v490 = vpack.c.bf16 %v461, %v459
        %v491 = vpack.c.bf16 %v466, %v464
        %v492 = vpack.c.bf16 %v471, %v469
        %v493 = vpack.c.bf16 %v476, %v474
        %v494 = vpack.c.bf16 %v481, %v479
        %v495 = vpack.c.bf16 %v486, %v484
        %v496 = vld [vmem:[%s2] sm:$0xf]
        %v497 = vld [vmem:[%s2 + $0x4] sm:$0xf]
        %v498 = vld [vmem:[%s2 + $0x8] sm:$0xf]
        %v499 = vld [vmem:[%s2 + $0xc] sm:$0xf]
        %v500 = vld [vmem:[%s2 + $0x10] sm:$0xf]
        %v501 = vld [vmem:[%s2 + $0x14] sm:$0xf]
        %v502 = vld [vmem:[%s2 + $0x18] sm:$0xf]
        %v503 = vld [vmem:[%s2 + $0x1c] sm:$0xf]
        %v504 = vld [vmem:[%s2 + $0x20] sm:$0xf]
        %v505 = vld [vmem:[%s2 + $0x24] sm:$0xf]
        %v506 = vld [vmem:[%s2 + $0x28] sm:$0xf]
        %v507 = vld [vmem:[%s2 + $0x2c] sm:$0xf]
        %v508 = vld [vmem:[%s2 + $0x30] sm:$0xf]
        %v509 = vld [vmem:[%s2 + $0x34] sm:$0xf]
        %v510 = vld [vmem:[%s2 + $0x38] sm:$0xf]
        %v511 = vld [vmem:[%s2 + $0x3c] sm:$0xf]
        %v512 = vld [vmem:[%s3] sm:$0x1]
        %v514 = vperm.slane %v512, 0
        %v532 = vunpack.c.l.b16 %v496
        %v533 = vunpack.c.l.b16 %v497
        %v534 = vunpack.c.l.b16 %v498
        %v535 = vunpack.c.l.b16 %v499
        %v536 = vunpack.c.l.b16 %v500
        %v537 = vunpack.c.l.b16 %v501
        %v538 = vunpack.c.l.b16 %v502
        %v539 = vunpack.c.l.b16 %v503
        %v540 = vunpack.c.l.b16 %v504
        %v541 = vunpack.c.l.b16 %v505
        %v542 = vunpack.c.l.b16 %v506
        %v543 = vunpack.c.l.b16 %v507
        %v544 = vunpack.c.l.b16 %v508
        %v545 = vunpack.c.l.b16 %v509
        %v546 = vunpack.c.l.b16 %v510
        %v547 = vunpack.c.l.b16 %v511
        %v548 = vpack.c.b16 %v533, %v532
        %v549 = vpack.c.b16 %v535, %v534
        %v550 = vpack.c.b16 %v537, %v536
        %v551 = vpack.c.b16 %v539, %v538
        %v552 = vpack.c.b16 %v541, %v540
        %v553 = vpack.c.b16 %v543, %v542
        %v554 = vpack.c.b16 %v545, %v544
        %v555 = vpack.c.b16 %v547, %v546
        %564 = vmatpush.bf16.msra.mxu0 %v555
        %565 = vmatpush.bf16.msra.mxu0 %v554
        %566 = vmatpush.bf16.msra.mxu0 %v553
        %567 = vmatpush.bf16.msra.mxu0 %v552
        %568 = vmatpush.bf16.msra.mxu0 %v551
        %569 = vmatpush.bf16.msra.mxu0 %v550
        %570 = vmatpush.bf16.msra.mxu0 %v549
        %571 = vmatpush.bf16.msra.mxu0 %v548
        %572 = vmatmul.bf16.gmra.mxu0 %v488
        %v573 = vpop.f32.mrf.mxu0
        %v574 = vadd.f32 %v514, %v573
        %v575 = vpop.f32.mrf.mxu0
        %v576 = vadd.f32 %v514, %v575
        %577 = vmatmul.bf16.gmra.mxu0 %v489
        %v578 = vpop.f32.mrf.mxu0
        %v579 = vadd.f32 %v514, %v578
        %v580 = vpop.f32.mrf.mxu0
        %v581 = vadd.f32 %v514, %v580
        %582 = vmatmul.bf16.gmra.mxu0 %v490
        %v583 = vpop.f32.mrf.mxu0
        %v584 = vadd.f32 %v514, %v583
        %v585 = vpop.f32.mrf.mxu0
        %v586 = vadd.f32 %v514, %v585
        %587 = vmatmul.bf16.gmra.mxu0 %v491
        %v588 = vpop.f32.mrf.mxu0
        %v589 = vadd.f32 %v514, %v588
        %v590 = vpop.f32.mrf.mxu0
        %v591 = vadd.f32 %v514, %v590
        %592 = vmatmul.bf16.gmra.mxu0 %v492
        %v593 = vpop.f32.mrf.mxu0
        %v594 = vadd.f32 %v514, %v593
        %v595 = vpop.f32.mrf.mxu0
        %v596 = vadd.f32 %v514, %v595
        %597 = vmatmul.bf16.gmra.mxu0 %v493
        %v598 = vpop.f32.mrf.mxu0
        %v599 = vadd.f32 %v514, %v598
        %v600 = vpop.f32.mrf.mxu0
        %v601 = vadd.f32 %v514, %v600
        %602 = vmatmul.bf16.gmra.mxu0 %v494
        %v603 = vpop.f32.mrf.mxu0
        %v604 = vadd.f32 %v514, %v603
        %v605 = vpop.f32.mrf.mxu0
        %v606 = vadd.f32 %v514, %v605
        %607 = vmatmul.bf16.gmra.mxu0 %v495
        %v608 = vpop.f32.mrf.mxu0
        %v609 = vadd.f32 %v514, %v608
        %v610 = vpop.f32.mrf.mxu0
        %v611 = vadd.f32 %v514, %v610
        %612 = vdwg.mxu0
        %v613 = vmax.f32 %v574, 0.0
        %v614 = vmax.f32 %v576, 0.0
        %v615 = vmax.f32 %v579, 0.0
        %v616 = vmax.f32 %v581, 0.0
        %v617 = vmax.f32 %v584, 0.0
        %v618 = vmax.f32 %v586, 0.0
        %v619 = vmax.f32 %v589, 0.0
        %v620 = vmax.f32 %v591, 0.0
        %v621 = vmax.f32 %v594, 0.0
        %v622 = vmax.f32 %v596, 0.0
        %v623 = vmax.f32 %v599, 0.0
        %v624 = vmax.f32 %v601, 0.0
        %v625 = vmax.f32 %v604, 0.0
        %v626 = vmax.f32 %v606, 0.0
        %v627 = vmax.f32 %v609, 0.0
        %v628 = vmax.f32 %v611, 0.0
        %v629 = vpack.c.bf16 %v614, %v613
        %v630 = vpack.c.bf16 %v616, %v615
        %v631 = vpack.c.bf16 %v618, %v617
        %v632 = vpack.c.bf16 %v620, %v619
        %v633 = vpack.c.bf16 %v622, %v621
        %v634 = vpack.c.bf16 %v624, %v623
        %v635 = vpack.c.bf16 %v626, %v625
        %v636 = vpack.c.bf16 %v628, %v627
        %v637 = vld [vmem:[%s4] sm:$0xf]
        %v638 = vld [vmem:[%s4 + $0x4] sm:$0xf]
        %v639 = vld [vmem:[%s4 + $0x8] sm:$0xf]
        %v640 = vld [vmem:[%s4 + $0xc] sm:$0xf]
        %v641 = vld [vmem:[%s4 + $0x10] sm:$0xf]
        %v642 = vld [vmem:[%s4 + $0x14] sm:$0xf]
        %v643 = vld [vmem:[%s4 + $0x18] sm:$0xf]
        %v644 = vld [vmem:[%s4 + $0x1c] sm:$0xf]
        %v645 = vld [vmem:[%s4 + $0x20] sm:$0xf]
        %v646 = vld [vmem:[%s4 + $0x24] sm:$0xf]
        %v647 = vld [vmem:[%s4 + $0x28] sm:$0xf]
        %v648 = vld [vmem:[%s4 + $0x2c] sm:$0xf]
        %v649 = vld [vmem:[%s4 + $0x30] sm:$0xf]
        %v650 = vld [vmem:[%s4 + $0x34] sm:$0xf]
        %v651 = vld [vmem:[%s4 + $0x38] sm:$0xf]
        %v652 = vld [vmem:[%s4 + $0x3c] sm:$0xf]
        %v653 = vld [vmem:[%s5] sm:$0x1]
        %v655 = vperm.slane %v653, 0
        %v673 = vunpack.c.l.b16 %v637
        %v674 = vunpack.c.l.b16 %v638
        %v675 = vunpack.c.l.b16 %v639
        %v676 = vunpack.c.l.b16 %v640
        %v677 = vunpack.c.l.b16 %v641
        %v678 = vunpack.c.l.b16 %v642
        %v679 = vunpack.c.l.b16 %v643
        %v680 = vunpack.c.l.b16 %v644
        %v681 = vunpack.c.l.b16 %v645
        %v682 = vunpack.c.l.b16 %v646
        %v683 = vunpack.c.l.b16 %v647
        %v684 = vunpack.c.l.b16 %v648
        %v685 = vunpack.c.l.b16 %v649
        %v686 = vunpack.c.l.b16 %v650
        %v687 = vunpack.c.l.b16 %v651
        %v688 = vunpack.c.l.b16 %v652
        %v689 = vpack.c.b16 %v674, %v673
        %v690 = vpack.c.b16 %v676, %v675
        %v691 = vpack.c.b16 %v678, %v677
        %v692 = vpack.c.b16 %v680, %v679
        %v693 = vpack.c.b16 %v682, %v681
        %v694 = vpack.c.b16 %v684, %v683
        %v695 = vpack.c.b16 %v686, %v685
        %v696 = vpack.c.b16 %v688, %v687
        %705 = vmatpush.bf16.msra.mxu0 %v696
        %706 = vmatpush.bf16.msra.mxu0 %v695
        %707 = vmatpush.bf16.msra.mxu0 %v694
        %708 = vmatpush.bf16.msra.mxu0 %v693
        %709 = vmatpush.bf16.msra.mxu0 %v692
        %710 = vmatpush.bf16.msra.mxu0 %v691
        %711 = vmatpush.bf16.msra.mxu0 %v690
        %712 = vmatpush.bf16.msra.mxu0 %v689
        %713 = vmatmul.bf16.gmra.mxu0 %v629
        %v714 = vpop.f32.mrf.mxu0
        %v715 = vadd.f32 %v655, %v714
        %v716 = vpop.f32.mrf.mxu0
        %v717 = vadd.f32 %v655, %v716
        %718 = vmatmul.bf16.gmra.mxu0 %v630
        %v719 = vpop.f32.mrf.mxu0
        %v720 = vadd.f32 %v655, %v719
        %v721 = vpop.f32.mrf.mxu0
        %v722 = vadd.f32 %v655, %v721
        %723 = vmatmul.bf16.gmra.mxu0 %v631
        %v724 = vpop.f32.mrf.mxu0
        %v725 = vadd.f32 %v655, %v724
        %v726 = vpop.f32.mrf.mxu0
        %v727 = vadd.f32 %v655, %v726
        %728 = vmatmul.bf16.gmra.mxu0 %v632
        %v729 = vpop.f32.mrf.mxu0
        %v730 = vadd.f32 %v655, %v729
        %v731 = vpop.f32.mrf.mxu0
        %v732 = vadd.f32 %v655, %v731
        %733 = vmatmul.bf16.gmra.mxu0 %v633
        %v734 = vpop.f32.mrf.mxu0
        %v735 = vadd.f32 %v655, %v734
        %v736 = vpop.f32.mrf.mxu0
        %v737 = vadd.f32 %v655, %v736
        %738 = vmatmul.bf16.gmra.mxu0 %v634
        %v739 = vpop.f32.mrf.mxu0
        %v740 = vadd.f32 %v655, %v739
        %v741 = vpop.f32.mrf.mxu0
        %v742 = vadd.f32 %v655, %v741
        %743 = vmatmul.bf16.gmra.mxu0 %v635
        %v744 = vpop.f32.mrf.mxu0
        %v745 = vadd.f32 %v655, %v744
        %v746 = vpop.f32.mrf.mxu0
        %v747 = vadd.f32 %v655, %v746
        %748 = vmatmul.bf16.gmra.mxu0 %v636
        %v749 = vpop.f32.mrf.mxu0
        %v750 = vadd.f32 %v655, %v749
        %v751 = vpop.f32.mrf.mxu0
        %v752 = vadd.f32 %v655, %v751
        %753 = vdwg.mxu0
        %754 = vmax.xlane.f32.xlu0 %v715
        %v755 = vpop.xlane.xlu0 %754
        %756 = vmax.xlane.f32.xlu0 %v717
        %v757 = vpop.xlane.xlu0 %756
        %758 = vmax.xlane.f32.xlu0 %v720
        %v759 = vpop.xlane.xlu0 %758
        %760 = vmax.xlane.f32.xlu0 %v722
        %v761 = vpop.xlane.xlu0 %760
        %762 = vmax.xlane.f32.xlu0 %v725
        %v763 = vpop.xlane.xlu0 %762
        %764 = vmax.xlane.f32.xlu0 %v727
        %v765 = vpop.xlane.xlu0 %764
        %766 = vmax.xlane.f32.xlu0 %v730
        %v767 = vpop.xlane.xlu0 %766
        %768 = vmax.xlane.f32.xlu0 %v732
        %v769 = vpop.xlane.xlu0 %768
        %770 = vmax.xlane.f32.xlu0 %v735
        %v771 = vpop.xlane.xlu0 %770
        %772 = vmax.xlane.f32.xlu0 %v737
        %v773 = vpop.xlane.xlu0 %772
        %774 = vmax.xlane.f32.xlu0 %v740
        %v775 = vpop.xlane.xlu0 %774
        %776 = vmax.xlane.f32.xlu0 %v742
        %v777 = vpop.xlane.xlu0 %776
        %778 = vmax.xlane.f32.xlu0 %v745
        %v779 = vpop.xlane.xlu0 %778
        %780 = vmax.xlane.f32.xlu0 %v747
        %v781 = vpop.xlane.xlu0 %780
        %782 = vmax.xlane.f32.xlu0 %v750
        %v783 = vpop.xlane.xlu0 %782
        %784 = vmax.xlane.f32.xlu0 %v752
        %v785 = vpop.xlane.xlu0 %784
        %v786 = vsub.f32 %v715, %v755
        %v787 = vsub.f32 %v717, %v757
        %v788 = vsub.f32 %v720, %v759
        %v789 = vsub.f32 %v722, %v761
        %v790 = vsub.f32 %v725, %v763
        %v791 = vsub.f32 %v727, %v765
        %v792 = vsub.f32 %v730, %v767
        %v793 = vsub.f32 %v732, %v769
        %v794 = vsub.f32 %v735, %v771
        %v795 = vsub.f32 %v737, %v773
        %v796 = vsub.f32 %v740, %v775
        %v797 = vsub.f32 %v742, %v777
        %v798 = vsub.f32 %v745, %v779
        %v799 = vsub.f32 %v747, %v781
        %v800 = vsub.f32 %v750, %v783
        %v801 = vsub.f32 %v752, %v785
        %v802 = vmul.f32 %v786, 1.442695
        %v803 = vpow.pop %v802
        %v804 = vmul.f32 %v787, 1.442695
        %v805 = vpow.pop %v804
        %v806 = vmul.f32 %v788, 1.442695
        %v807 = vpow.pop %v806
        %v808 = vmul.f32 %v789, 1.442695
        %v809 = vpow.pop %v808
        %v810 = vmul.f32 %v790, 1.442695
        %v811 = vpow.pop %v810
        %v812 = vmul.f32 %v791, 1.442695
        %v813 = vpow.pop %v812
        %v814 = vmul.f32 %v792, 1.442695
        %v815 = vpow.pop %v814
        %v816 = vmul.f32 %v793, 1.442695
        %v817 = vpow.pop %v816
        %v818 = vmul.f32 %v794, 1.442695
        %v819 = vpow.pop %v818
        %v820 = vmul.f32 %v795, 1.442695
        %v821 = vpow.pop %v820
        %v822 = vmul.f32 %v796, 1.442695
        %v823 = vpow.pop %v822
        %v824 = vmul.f32 %v797, 1.442695
        %v825 = vpow.pop %v824
        %v826 = vmul.f32 %v798, 1.442695
        %v827 = vpow.pop %v826
        %v828 = vmul.f32 %v799, 1.442695
        %v829 = vpow.pop %v828
        %v830 = vmul.f32 %v800, 1.442695
        %v831 = vpow.pop %v830
        %v832 = vmul.f32 %v801, 1.442695
        %v833 = vpow.pop %v832
        %834 = vadd.xlane.f32.xlu0 %v803
        %v835 = vpop.xlane.xlu0 %834
        %836 = vadd.xlane.f32.xlu0 %v805
        %v837 = vpop.xlane.xlu0 %836
        %838 = vadd.xlane.f32.xlu0 %v807
        %v839 = vpop.xlane.xlu0 %838
        %840 = vadd.xlane.f32.xlu0 %v809
        %v841 = vpop.xlane.xlu0 %840
        %842 = vadd.xlane.f32.xlu0 %v811
        %v843 = vpop.xlane.xlu0 %842
        %844 = vadd.xlane.f32.xlu0 %v813
        %v845 = vpop.xlane.xlu0 %844
        %846 = vadd.xlane.f32.xlu0 %v815
        %v847 = vpop.xlane.xlu0 %846
        %848 = vadd.xlane.f32.xlu0 %v817
        %v849 = vpop.xlane.xlu0 %848
        %850 = vadd.xlane.f32.xlu0 %v819
        %v851 = vpop.xlane.xlu0 %850
        %852 = vadd.xlane.f32.xlu0 %v821
        %v853 = vpop.xlane.xlu0 %852
        %854 = vadd.xlane.f32.xlu0 %v823
        %v855 = vpop.xlane.xlu0 %854
        %856 = vadd.xlane.f32.xlu0 %v825
        %v857 = vpop.xlane.xlu0 %856
        %858 = vadd.xlane.f32.xlu0 %v827
        %v859 = vpop.xlane.xlu0 %858
        %860 = vadd.xlane.f32.xlu0 %v829
        %v861 = vpop.xlane.xlu0 %860
        %862 = vadd.xlane.f32.xlu0 %v831
        %v863 = vpop.xlane.xlu0 %862
        %864 = vadd.xlane.f32.xlu0 %v833
        %v865 = vpop.xlane.xlu0 %864
        %v866 = vrcp.pop %v835
        %v867 = vrcp.pop %v837
        %v868 = vrcp.pop %v839
        %v869 = vrcp.pop %v841
        %v870 = vrcp.pop %v843
        %v871 = vrcp.pop %v845
        %v872 = vrcp.pop %v847
        %v873 = vrcp.pop %v849
        %v874 = vrcp.pop %v851
        %v875 = vrcp.pop %v853
        %v876 = vrcp.pop %v855
        %v877 = vrcp.pop %v857
        %v878 = vrcp.pop %v859
        %v879 = vrcp.pop %v861
        %v880 = vrcp.pop %v863
        %v881 = vrcp.pop %v865
        %v882 = vmul.f32 %v803, %v866
        %v883 = vmul.f32 %v805, %v867
        %v884 = vmul.f32 %v807, %v868
        %v885 = vmul.f32 %v809, %v869
        %v886 = vmul.f32 %v811, %v870
        %v887 = vmul.f32 %v813, %v871
        %v888 = vmul.f32 %v815, %v872
        %v889 = vmul.f32 %v817, %v873
        %v890 = vmul.f32 %v819, %v874
        %v891 = vmul.f32 %v821, %v875
        %v892 = vmul.f32 %v823, %v876
        %v893 = vmul.f32 %v825, %v877
        %v894 = vmul.f32 %v827, %v878
        %v895 = vmul.f32 %v829, %v879
        %v896 = vmul.f32 %v831, %v880
        %v897 = vmul.f32 %v833, %v881
        %898 = vst [vmem:[%s245] sm:$0xff] %v882
        %899 = vst [vmem:[%s245 + $0x8] sm:$0xff] %v883
        %900 = vst [vmem:[%s245 + $0x10] sm:$0xff] %v884
        %901 = vst [vmem:[%s245 + $0x18] sm:$0xff] %v885
        %902 = vst [vmem:[%s245 + $0x20] sm:$0xff] %v886
        %903 = vst [vmem:[%s245 + $0x28] sm:$0xff] %v887
        %904 = vst [vmem:[%s245 + $0x30] sm:$0xff] %v888
        %905 = vst [vmem:[%s245 + $0x38] sm:$0xff] %v889
        %906 = vst [vmem:[%s245 + $0x40] sm:$0xff] %v890
        %907 = vst [vmem:[%s245 + $0x48] sm:$0xff] %v891
        %908 = vst [vmem:[%s245 + $0x50] sm:$0xff] %v892
        %909 = vst [vmem:[%s245 + $0x58] sm:$0xff] %v893
        %910 = vst [vmem:[%s245 + $0x60] sm:$0xff] %v894
        %911 = vst [vmem:[%s245 + $0x68] sm:$0xff] %v895
        %912 = vst [vmem:[%s245 + $0x70] sm:$0xff] %v896
        %913 = vst [vmem:[%s245 + $0x78] sm:$0xff] %v897
        %s914 = sand.u32 %s159, 1
        %s915 = scalar_lea.sflag [#allocation3], %s914
        %s916 = sand.u32 %s159, 1
        %s917 = smul.addr %s916, 128
        %s918 = scalar_lea.vmem [#allocation2], %s917
        // Predicated region
        $region45: #{tpu_custom_call.1} parent=43 // pred_check
          %p919 = pneg %p169
        $region46: #{tpu_custom_call.1} parent=43 // pred_check_branch
          %921 = sbr.rel (%p919) target = $region48
        $region47: #{tpu_custom_call.1} parent=43 // pred_region
          %s922 = smul.u32 16, %s20
          %924 = vsyncadd %s915, 0
          %s925 = smul.addr %s922, 8
          %s926 = scalar_lea.hbm %s6, %s925
          %s927 = sshll.u32 %s918, 4
          %s928 = int_to_ptr.vmem [resolvable:$true] %s927
          %s929 = sshll.u32 %s926, 4
          %s930 = int_to_ptr.hbm [resolvable:$true] %s929
          %935 = dma.vmem_to_hbm [thread:$0]  %s928, 2048, %s930, %s915, 128, 128, 8
        $region48: #{tpu_custom_call.1} parent=43 // pred_fallthru
          _
      $region44: #{tpu_custom_call.1} parent=5 // pred_fallthru
        _
      %p936 = scmp.le.s32.totalorder 2, %s15
      // Predicated region
      $region49: #{tpu_custom_call.1} parent=5 // pred_check
        %p937 = pneg %p936
      $region50: #{tpu_custom_call.1} parent=5 // pred_check_branch
        %939 = sbr.rel (%p937) target = $region52
      $region51: #{tpu_custom_call.1} parent=5 // pred_region
        %s940 = ssub.s32 %s15, 2
        // Predicated region
        $region53: #{tpu_custom_call.1} parent=51 // pred_check
          %p941 = pneg %p175
        $region54: #{tpu_custom_call.1} parent=51 // pred_check_branch
          %943 = sbr.rel (%p941) target = $region56
        $region55: #{tpu_custom_call.1} parent=51 // pred_region
          %s944 = sand.u32 %s160, 1
          %s945 = scalar_lea.sflag [#allocation3], %s944
          %s946 = sand.u32 %s160, 1
          %s947 = smul.addr %s946, 128
          %s948 = scalar_lea.vmem [#allocation2], %s947
          %950 = dma.done %s945, 2048
        $region56: #{tpu_custom_call.1} parent=51 // pred_fallthru
          _
      $region52: #{tpu_custom_call.1} parent=5 // pred_fallthru
        _
    $region6: #{tpu_custom_call.1} parent=1 // loop_footer
      %s19 = sadd.s32 1, %s15
    $region7: #{tpu_custom_call.1} parent=1 // loop_footer_branch
      %14 = sbr.rel target = $region3
    $region8: #{tpu_custom_call.1} parent=1 // loop_exit
      _
    %951 = vsyncpa [#allocation3], 1
    %s952 = scalar_lea.sflag [#allocation3], 1
    %953 = vsyncpa %s952, 1

</llo_original>
